<compile_context>
chip_gen: v7x
topology: tpu7x:2x2x1
jax: 0.10.0
libtpu: 0.0.40
codegen_flags: <defaults>
</compile_context>

<pallas_src>
import jax
import jax.numpy as jnp
from jax.experimental import pallas as pl
from jax.experimental.pallas import tpu as pltpu

HIDDEN = 128
LN_EPS = 1e-5
LEAKY_SLOPE = 0.01  # PyTorch nn.LeakyReLU default


def _round_up(n, m):
    return ((n + m - 1) // m) * m


def _maml_kernel(x_ref, w1_ref, b1_ref, w2_ref, b2_ref, g_ref, beta_ref,
                 w3_ref, b3_ref, w4_ref, b4_ref, o_ref):
    mm_dtype = w1_ref.dtype  # bf16 on the fast path, f32 otherwise

    x = x_ref[...]  # already cast to mm_dtype in the wrapper

    # Linear 1 + ReLU        (Dropout -> identity in eval mode)
    h = jnp.dot(x, w1_ref[...], preferred_element_type=jnp.float32) + b1_ref[...]
    h = jnp.maximum(h, 0.0)

    # Linear 2 + LeakyReLU   (Dropout -> identity)
    h = jnp.dot(h.astype(mm_dtype), w2_ref[...],
                preferred_element_type=jnp.float32) + b2_ref[...]
    h = jnp.maximum(h, LEAKY_SLOPE * h)  # slope < 1 => identical to where(h>0,...)

    # LayerNorm over the feature (last) axis — f32 on all generations.
    # var = E[h^2] - E[h]^2: the two XLU reductions are independent.
    mean = jnp.mean(h, axis=-1, keepdims=True)
    msq = jnp.mean(h * h, axis=-1, keepdims=True)
    var = jnp.maximum(msq - mean * mean, 0.0)
    h = (h - mean) * jax.lax.rsqrt(var + LN_EPS) * g_ref[...] + beta_ref[...]

    # Linear 3 + ReLU        (Dropout -> identity)
    h = jnp.dot(h.astype(mm_dtype), w3_ref[...],
                preferred_element_type=jnp.float32) + b3_ref[...]
    h = jnp.maximum(h, 0.0)

    # Linear 4 (output head, stored unpadded — masked vst, but 16x fewer HBM bytes)
    out = jnp.dot(h.astype(mm_dtype), w4_ref[...],
                  preferred_element_type=jnp.float32) + b4_ref[...]
    o_ref[...] = out.astype(o_ref.dtype)


def maml_forward(x, params, *, batch_tile=None, matmul_dtype=None):
    """x: (B, input_size) f32.  params: dict of weights in (in, out) layout.

    matmul_dtype: None -> f32 matmuls (bit-faithful to the PyTorch f32 module);
                  jnp.bfloat16 -> bf16 MXU fast path (beneficial on v5e/v6e/v7x),
                  f32 accumulation; bias adds / LeakyReLU / LayerNorm stay f32.
    """
    B, in_sz = x.shape
    hid = params["w1"].shape[1]
    out_sz = params["w4"].shape[1]

    mm_dtype = jnp.float32 if matmul_dtype is None else matmul_dtype

    # Batch-tile heuristic:
    #   small B  -> one grid step (per-step overhead ~0.35 us dominates);
    #   larger B -> >=2 grid steps so v7x's two TensorCores are both used,
    #               512-1024 row tiles (~85% of HBM roofline in measurements).
    if batch_tile is None:
        B8 = _round_up(B, 8)
        if B8 <= 256:
            batch_tile = B8
        else:
            batch_tile = min(1024, _round_up((B8 + 1) // 2, 8))
    else:
        batch_tile = _round_up(batch_tile, 8)
    B_pad = _round_up(B, batch_tile)

    # x: no lane padding (block last dim == full array dim is legal); cast to
    # the matmul dtype in the wrapper so the DMA already moves narrow data.
    x_p = x.astype(mm_dtype)
    if B_pad != B:
        x_p = jnp.pad(x_p, ((0, B_pad - B), (0, 0)))

    w1 = params["w1"].astype(mm_dtype)
    w2 = params["w2"].astype(mm_dtype)
    w3 = params["w3"].astype(mm_dtype)
    w4 = params["w4"].astype(mm_dtype)
    b1 = params["b1"].astype(jnp.float32)
    b2 = params["b2"].astype(jnp.float32)
    b3 = params["b3"].astype(jnp.float32)
    b4 = params["b4"].astype(jnp.float32)
    g = params["ln_g"].astype(jnp.float32)
    beta = params["ln_b"].astype(jnp.float32)

    # Grid-invariant params: constant index_map keeps them VMEM-resident.
    full = lambda arr: pl.BlockSpec(arr.shape, lambda i: (0, 0))
    in_specs = [
        pl.BlockSpec((batch_tile, in_sz), lambda i: (i, 0)),    # x (unpadded lanes)
        full(w1), full(b1),                                     # layer 1
        full(w2), full(b2),                                     # layer 2
        full(g), full(beta),                                    # LayerNorm
        full(w3), full(b3),                                     # layer 3
        full(w4), full(b4),                                     # layer 4
    ]
    # Unpadded output block: last block dim == full array dim (out_sz) -> legal.
    out_spec = pl.BlockSpec((batch_tile, out_sz), lambda i: (i, 0))

    # VMEM budget: double-buffered x/out tiles + params + ~3 live (tile, hid)
    # f32 activations + slack; 32 MiB cap leaves headroom on v7x (64 MiB phys).
    nbytes = lambda a: a.size * a.dtype.itemsize
    param_bytes = sum(nbytes(a) for a in (w1, b1, w2, b2, g, beta, w3, b3, w4, b4))
    itemsize = jnp.dtype(mm_dtype).itemsize
    x_tile_bytes = batch_tile * in_sz * itemsize
    out_tile_bytes = batch_tile * out_sz * 4
    act_bytes = 3 * batch_tile * hid * 4
    vmem_limit = (2 * (x_tile_bytes + out_tile_bytes)
                  + 2 * param_bytes + act_bytes + (4 << 20))
    vmem_limit = int(min(max(vmem_limit, 8 << 20), 32 << 20))

    out = pl.pallas_call(
        _maml_kernel,
        out_shape=jax.ShapeDtypeStruct((B_pad, out_sz), jnp.float32),
        grid_spec=pltpu.PrefetchScalarGridSpec(
            num_scalar_prefetch=0,
            grid=(B_pad // batch_tile,),
            in_specs=in_specs,
            out_specs=out_spec,
        ),
        compiler_params=pltpu.CompilerParams(
            dimension_semantics=("parallel",),   # batch axis shards across TCs on v7x
            vmem_limit_bytes=vmem_limit,
        ),
    )(x_p, w1, b1, w2, b2, g, beta, w3, b3, w4, b4)

    return out[:B] if B_pad != B else out


def init_params(key, input_size, output_size, hidden_size=HIDDEN):
    """Deterministic init mimicking nn.Linear defaults: U(-1/sqrt(fan_in), +1/sqrt(fan_in))."""
    def linear(k, fan_in, fan_out):
        kw, kb = jax.random.split(k)
        bound = 1.0 / jnp.sqrt(fan_in)
        w = jax.random.uniform(kw, (fan_in, fan_out), jnp.float32, -bound, bound)
        b = jax.random.uniform(kb, (1, fan_out), jnp.float32, -bound, bound)
        return w, b

    k1, k2, k3, k4 = jax.random.split(key, 4)
    w1, b1 = linear(k1, input_size, hidden_size)
    w2, b2 = linear(k2, hidden_size, hidden_size)
    w3, b3 = linear(k3, hidden_size, hidden_size)
    w4, b4 = linear(k4, hidden_size, output_size)
    return {
        "w1": w1, "b1": b1,
        "w2": w2, "b2": b2,
        "ln_g": jnp.ones((1, hidden_size), jnp.float32),   # LayerNorm init
        "ln_b": jnp.zeros((1, hidden_size), jnp.float32),
        "w3": w3, "b3": b3,
        "w4": w4, "b4": b4,
    }


def _reference(x, p):
    h = jnp.maximum(x @ p["w1"] + p["b1"], 0.0)
    h = h @ p["w2"] + p["b2"]
    h = jnp.where(h > 0.0, h, LEAKY_SLOPE * h)
    mean = jnp.mean(h, axis=-1, keepdims=True)
    var = jnp.mean((h - mean) ** 2, axis=-1, keepdims=True)
    h = (h - mean) * jax.lax.rsqrt(var + LN_EPS) * p["ln_g"] + p["ln_b"]
    h = jnp.maximum(h @ p["w3"] + p["b3"], 0.0)
    return h @ p["w4"] + p["b4"]


if __name__ == "__main__":
    INPUT_SIZE, OUTPUT_SIZE, BATCH = 32, 8, 16

    key = jax.random.PRNGKey(0)
    kx, kp, kx2 = jax.random.split(key, 3)
    x = jax.random.normal(kx, (BATCH, INPUT_SIZE), jnp.float32)
    params = init_params(kp, INPUT_SIZE, OUTPUT_SIZE)

    # f32 path (single grid step covering the whole batch).
    out = jax.block_until_ready(maml_forward(x, params))
    ref = _reference(x, params)
    assert out.shape == (BATCH, OUTPUT_SIZE)
    assert jnp.allclose(out, ref, atol=1e-4, rtol=1e-4)

    # bf16-matmul fast path (x cast to bf16 in wrapper); looser tolerance.
    out_bf16 = jax.block_until_ready(
        maml_forward(x, params, matmul_dtype=jnp.bfloat16))
    assert out_bf16.shape == (BATCH, OUTPUT_SIZE)
    assert jnp.allclose(out_bf16, ref, atol=1e-1, rtol=1e-1)

    # Larger batch, default heuristic: B=272 -> 2 grid steps of 136 rows
    # (exercises the >=2-step / both-TensorCores path).
    x_big = jax.random.normal(kx2, (272, INPUT_SIZE), jnp.float32)
    ref_big = _reference(x_big, params)
    out_big = jax.block_until_ready(maml_forward(x_big, params))
    assert out_big.shape == (272, OUTPUT_SIZE)
    assert jnp.allclose(out_big, ref_big, atol=1e-4, rtol=1e-4)

    # Explicit 128-row tiles -> grid=(3,), exercises batch padding + slicing.
    out_tiled = jax.block_until_ready(maml_forward(x_big, params, batch_tile=128))
    assert out_tiled.shape == (272, OUTPUT_SIZE)
    assert jnp.allclose(out_tiled, ref_big, atol=1e-4, rtol=1e-4)

    print("KERNEL_OK")
</pallas_src>

<mosaic_0001>
module attributes {stable_mosaic.version = 11 : i64} {
  func.func @_maml_kernel(%arg0: i32, %arg1: memref<16x32xf32, #tpu.memory_space<vmem>>, %arg2: memref<32x128xf32, #tpu.memory_space<vmem>>, %arg3: memref<1x128xf32, #tpu.memory_space<vmem>>, %arg4: memref<128x128xf32, #tpu.memory_space<vmem>>, %arg5: memref<1x128xf32, #tpu.memory_space<vmem>>, %arg6: memref<1x128xf32, #tpu.memory_space<vmem>>, %arg7: memref<1x128xf32, #tpu.memory_space<vmem>>, %arg8: memref<128x128xf32, #tpu.memory_space<vmem>>, %arg9: memref<1x128xf32, #tpu.memory_space<vmem>>, %arg10: memref<128x8xf32, #tpu.memory_space<vmem>>, %arg11: memref<1x8xf32, #tpu.memory_space<vmem>>, %arg12: memref<16x8xf32, #tpu.memory_space<vmem>>) attributes {dimension_semantics = [#tpu.dimension_semantics<parallel>], iteration_bounds = array<i64: 1>, scalar_prefetch = 0 : i64, scratch_operands = 0 : i64, tpu.core_type = #tpu.core_type<tc>, window_params = [{transform_indices = @transform_0, window_bounds = array<i64: 16, 32>}, {pipeline_mode = #tpu.pipeline_mode<synchronous>, transform_indices = @transform_1, window_bounds = array<i64: 32, 128>}, {pipeline_mode = #tpu.pipeline_mode<synchronous>, transform_indices = @transform_2, window_bounds = array<i64: 1, 128>}, {pipeline_mode = #tpu.pipeline_mode<synchronous>, transform_indices = @transform_3, window_bounds = array<i64: 128, 128>}, {pipeline_mode = #tpu.pipeline_mode<synchronous>, transform_indices = @transform_4, window_bounds = array<i64: 1, 128>}, {pipeline_mode = #tpu.pipeline_mode<synchronous>, transform_indices = @transform_5, window_bounds = array<i64: 1, 128>}, {pipeline_mode = #tpu.pipeline_mode<synchronous>, transform_indices = @transform_6, window_bounds = array<i64: 1, 128>}, {pipeline_mode = #tpu.pipeline_mode<synchronous>, transform_indices = @transform_7, window_bounds = array<i64: 128, 128>}, {pipeline_mode = #tpu.pipeline_mode<synchronous>, transform_indices = @transform_8, window_bounds = array<i64: 1, 128>}, {pipeline_mode = #tpu.pipeline_mode<synchronous>, transform_indices = @transform_9, window_bounds = array<i64: 128, 8>}, {pipeline_mode = #tpu.pipeline_mode<synchronous>, transform_indices = @transform_10, window_bounds = array<i64: 1, 8>}, {transform_indices = @transform_11, window_bounds = array<i64: 16, 8>}]} {
    %c0 = arith.constant 0 : index
    %c0_0 = arith.constant 0 : index
    %0 = vector.load %arg1[%c0, %c0_0] : memref<16x32xf32, #tpu.memory_space<vmem>>, vector<16x32xf32>
    %c0_1 = arith.constant 0 : index
    %c0_2 = arith.constant 0 : index
    %1 = vector.load %arg2[%c0_1, %c0_2] : memref<32x128xf32, #tpu.memory_space<vmem>>, vector<32x128xf32>
    %cst = arith.constant dense<0.000000e+00> : vector<16x128xf32>
    %2 = tpu.matmul %0, %1, %cst {dimension_numbers = #tpu.dot_dimension_numbers<[1], [0], [0], [1], [0, 0, 1, 1], [], []>} : vector<16x32xf32>, vector<32x128xf32>, vector<16x128xf32> -> vector<16x128xf32>
    %c0_3 = arith.constant 0 : index
    %c0_4 = arith.constant 0 : index
    %3 = vector.load %arg3[%c0_3, %c0_4] : memref<1x128xf32, #tpu.memory_space<vmem>>, vector<1x128xf32>
    %4 = vector.broadcast %3 : vector<1x128xf32> to vector<16x128xf32>
    %5 = arith.addf %2, %4 : vector<16x128xf32>
    %cst_5 = arith.constant 0.000000e+00 : f32
    %6 = vector.broadcast %cst_5 : f32 to vector<16x128xf32>
    %7 = arith.maximumf %5, %6 : vector<16x128xf32>
    %c0_6 = arith.constant 0 : index
    %c0_7 = arith.constant 0 : index
    %8 = vector.load %arg4[%c0_6, %c0_7] : memref<128x128xf32, #tpu.memory_space<vmem>>, vector<128x128xf32>
    %cst_8 = arith.constant dense<0.000000e+00> : vector<16x128xf32>
    %9 = tpu.matmul %7, %8, %cst_8 {dimension_numbers = #tpu.dot_dimension_numbers<[1], [0], [0], [1], [0, 0, 1, 1], [], []>} : vector<16x128xf32>, vector<128x128xf32>, vector<16x128xf32> -> vector<16x128xf32>
    %c0_9 = arith.constant 0 : index
    %c0_10 = arith.constant 0 : index
    %10 = vector.load %arg5[%c0_9, %c0_10] : memref<1x128xf32, #tpu.memory_space<vmem>>, vector<1x128xf32>
    %11 = vector.broadcast %10 : vector<1x128xf32> to vector<16x128xf32>
    %12 = arith.addf %9, %11 : vector<16x128xf32>
    %cst_11 = arith.constant 0.00999999977 : f32
    %13 = vector.broadcast %cst_11 : f32 to vector<16x128xf32>
    %14 = arith.mulf %13, %12 : vector<16x128xf32>
    %15 = arith.maximumf %12, %14 : vector<16x128xf32>
    %cst_12 = arith.constant dense<0.000000e+00> : vector<16xf32>
    %16 = vector.multi_reduction <add>, %15, %cst_12 [1] : vector<16x128xf32> to vector<16xf32>
    %17 = vector.shape_cast %16 : vector<16xf32> to vector<16x1xf32>
    %cst_13 = arith.constant 1.280000e+02 : f32
    %18 = vector.broadcast %cst_13 : f32 to vector<16x1xf32>
    %19 = arith.divf %17, %18 : vector<16x1xf32>
    %20 = arith.mulf %15, %15 : vector<16x128xf32>
    %cst_14 = arith.constant dense<0.000000e+00> : vector<16xf32>
    %21 = vector.multi_reduction <add>, %20, %cst_14 [1] : vector<16x128xf32> to vector<16xf32>
    %22 = vector.shape_cast %21 : vector<16xf32> to vector<16x1xf32>
    %cst_15 = arith.constant 1.280000e+02 : f32
    %23 = vector.broadcast %cst_15 : f32 to vector<16x1xf32>
    %24 = arith.divf %22, %23 : vector<16x1xf32>
    %25 = arith.mulf %19, %19 : vector<16x1xf32>
    %26 = arith.subf %24, %25 : vector<16x1xf32>
    %cst_16 = arith.constant 0.000000e+00 : f32
    %27 = vector.broadcast %cst_16 : f32 to vector<16x1xf32>
    %28 = arith.maximumf %26, %27 : vector<16x1xf32>
    %29 = vector.broadcast %19 : vector<16x1xf32> to vector<16x128xf32>
    %30 = arith.subf %15, %29 : vector<16x128xf32>
    %cst_17 = arith.constant 9.99999974E-6 : f32
    %31 = vector.broadcast %cst_17 : f32 to vector<16x1xf32>
    %32 = arith.addf %28, %31 : vector<16x1xf32>
    %33 = math.rsqrt %32 : vector<16x1xf32>
    %34 = vector.broadcast %33 : vector<16x1xf32> to vector<16x128xf32>
    %35 = arith.mulf %30, %34 : vector<16x128xf32>
    %c0_18 = arith.constant 0 : index
    %c0_19 = arith.constant 0 : index
    %36 = vector.load %arg6[%c0_18, %c0_19] : memref<1x128xf32, #tpu.memory_space<vmem>>, vector<1x128xf32>
    %37 = vector.broadcast %36 : vector<1x128xf32> to vector<16x128xf32>
    %38 = arith.mulf %35, %37 : vector<16x128xf32>
    %c0_20 = arith.constant 0 : index
    %c0_21 = arith.constant 0 : index
    %39 = vector.load %arg7[%c0_20, %c0_21] : memref<1x128xf32, #tpu.memory_space<vmem>>, vector<1x128xf32>
    %40 = vector.broadcast %39 : vector<1x128xf32> to vector<16x128xf32>
    %41 = arith.addf %38, %40 : vector<16x128xf32>
    %c0_22 = arith.constant 0 : index
    %c0_23 = arith.constant 0 : index
    %42 = vector.load %arg8[%c0_22, %c0_23] : memref<128x128xf32, #tpu.memory_space<vmem>>, vector<128x128xf32>
    %cst_24 = arith.constant dense<0.000000e+00> : vector<16x128xf32>
    %43 = tpu.matmul %41, %42, %cst_24 {dimension_numbers = #tpu.dot_dimension_numbers<[1], [0], [0], [1], [0, 0, 1, 1], [], []>} : vector<16x128xf32>, vector<128x128xf32>, vector<16x128xf32> -> vector<16x128xf32>
    %c0_25 = arith.constant 0 : index
    %c0_26 = arith.constant 0 : index
    %44 = vector.load %arg9[%c0_25, %c0_26] : memref<1x128xf32, #tpu.memory_space<vmem>>, vector<1x128xf32>
    %45 = vector.broadcast %44 : vector<1x128xf32> to vector<16x128xf32>
    %46 = arith.addf %43, %45 : vector<16x128xf32>
    %cst_27 = arith.constant 0.000000e+00 : f32
    %47 = vector.broadcast %cst_27 : f32 to vector<16x128xf32>
    %48 = arith.maximumf %46, %47 : vector<16x128xf32>
    %c0_28 = arith.constant 0 : index
    %c0_29 = arith.constant 0 : index
    %49 = vector.load %arg10[%c0_28, %c0_29] : memref<128x8xf32, #tpu.memory_space<vmem>>, vector<128x8xf32>
    %cst_30 = arith.constant dense<0.000000e+00> : vector<16x8xf32>
    %50 = tpu.matmul %48, %49, %cst_30 {dimension_numbers = #tpu.dot_dimension_numbers<[1], [0], [0], [1], [0, 0, 1, 1], [], []>} : vector<16x128xf32>, vector<128x8xf32>, vector<16x8xf32> -> vector<16x8xf32>
    %c0_31 = arith.constant 0 : index
    %c0_32 = arith.constant 0 : index
    %51 = vector.load %arg11[%c0_31, %c0_32] : memref<1x8xf32, #tpu.memory_space<vmem>>, vector<1x8xf32>
    %52 = vector.broadcast %51 : vector<1x8xf32> to vector<16x8xf32>
    %53 = arith.addf %50, %52 : vector<16x8xf32>
    %c0_33 = arith.constant 0 : index
    %c0_34 = arith.constant 0 : index
    %54 = vector.load %arg12[%c0_33, %c0_34] : memref<16x8xf32, #tpu.memory_space<vmem>>, vector<16x8xf32>
    tpu.vector_store %arg12[%c0_33, %c0_34], %53 {strides = array<i32>} : memref<16x8xf32, #tpu.memory_space<vmem>>, vector<16x8xf32>,
    return
  }
  func.func @transform_0(%arg0: i32) -> (i32, i32) {
    %c0_i32 = arith.constant 0 : i32
    %c0_i32_0 = arith.constant 0 : i32
    return %arg0, %c0_i32 : i32, i32
  }
  func.func @transform_1(%arg0: i32) -> (i32, i32) {
    %c0_i32 = arith.constant 0 : i32
    %c0_i32_0 = arith.constant 0 : i32
    %c0_i32_1 = arith.constant 0 : i32
    return %c0_i32, %c0_i32_0 : i32, i32
  }
  func.func @transform_2(%arg0: i32) -> (i32, i32) {
    %c0_i32 = arith.constant 0 : i32
    %c0_i32_0 = arith.constant 0 : i32
    %c0_i32_1 = arith.constant 0 : i32
    return %c0_i32, %c0_i32_0 : i32, i32
  }
  func.func @transform_3(%arg0: i32) -> (i32, i32) {
    %c0_i32 = arith.constant 0 : i32
    %c0_i32_0 = arith.constant 0 : i32
    %c0_i32_1 = arith.constant 0 : i32
    return %c0_i32, %c0_i32_0 : i32, i32
  }
  func.func @transform_4(%arg0: i32) -> (i32, i32) {
    %c0_i32 = arith.constant 0 : i32
    %c0_i32_0 = arith.constant 0 : i32
    %c0_i32_1 = arith.constant 0 : i32
    return %c0_i32, %c0_i32_0 : i32, i32
  }
  func.func @transform_5(%arg0: i32) -> (i32, i32) {
    %c0_i32 = arith.constant 0 : i32
    %c0_i32_0 = arith.constant 0 : i32
    %c0_i32_1 = arith.constant 0 : i32
    return %c0_i32, %c0_i32_0 : i32, i32
  }
  func.func @transform_6(%arg0: i32) -> (i32, i32) {
    %c0_i32 = arith.constant 0 : i32
    %c0_i32_0 = arith.constant 0 : i32
    %c0_i32_1 = arith.constant 0 : i32
    return %c0_i32, %c0_i32_0 : i32, i32
  }
  func.func @transform_7(%arg0: i32) -> (i32, i32) {
    %c0_i32 = arith.constant 0 : i32
    %c0_i32_0 = arith.constant 0 : i32
    %c0_i32_1 = arith.constant 0 : i32
    return %c0_i32, %c0_i32_0 : i32, i32
  }
  func.func @transform_8(%arg0: i32) -> (i32, i32) {
    %c0_i32 = arith.constant 0 : i32
    %c0_i32_0 = arith.constant 0 : i32
    %c0_i32_1 = arith.constant 0 : i32
    return %c0_i32, %c0_i32_0 : i32, i32
  }
  func.func @transform_9(%arg0: i32) -> (i32, i32) {
    %c0_i32 = arith.constant 0 : i32
    %c0_i32_0 = arith.constant 0 : i32
    %c0_i32_1 = arith.constant 0 : i32
    return %c0_i32, %c0_i32_0 : i32, i32
  }
  func.func @transform_10(%arg0: i32) -> (i32, i32) {
    %c0_i32 = arith.constant 0 : i32
    %c0_i32_0 = arith.constant 0 : i32
    %c0_i32_1 = arith.constant 0 : i32
    return %c0_i32, %c0_i32_0 : i32, i32
  }
  func.func @transform_11(%arg0: i32) -> (i32, i32) {
    %c0_i32 = arith.constant 0 : i32
    %c0_i32_0 = arith.constant 0 : i32
    return %arg0, %c0_i32 : i32, i32
  }
}

</mosaic_0001>

<llo_original>
// kernel: tpu_custom_call.1
$region0: #{tpu_custom_call.1}
  #allocation0 [shape = 'u32[]', space=smem, size = 0x4, offset = 0x4, fixed_abs, tag = 'smem constant byte address 0x4 - core index']
  #allocation1 [shape = 'u32[144,128]{1,0:T(1,128)}', space=vmem, size = 0x12000, scoped, tag = 'internal scratch']
  %s0 = inlined_call_operand.vmem [shape: f32[16,32], index: 0, kind: input, shape index: {}]
  %s1 = inlined_call_operand.hbm [shape: f32[32,128], index: 1, kind: input, shape index: {}]
  %s2 = inlined_call_operand.vmem [shape: f32[1,128], index: 2, kind: input, shape index: {}]
  %s3 = inlined_call_operand.vmem [shape: f32[128,128], index: 3, kind: input, shape index: {}]
  %s4 = inlined_call_operand.vmem [shape: f32[1,128], index: 4, kind: input, shape index: {}]
  %s5 = inlined_call_operand.hbm [shape: f32[1,128], index: 5, kind: input, shape index: {}]
  %s6 = inlined_call_operand.vmem [shape: f32[1,128], index: 6, kind: input, shape index: {}]
  %s7 = inlined_call_operand.hbm [shape: f32[128,128], index: 7, kind: input, shape index: {}]
  %s8 = inlined_call_operand.vmem [shape: f32[1,128], index: 8, kind: input, shape index: {}]
  %s9 = inlined_call_operand.vmem [shape: f32[128,8], index: 9, kind: input, shape index: {}]
  %s10 = inlined_call_operand.vmem [shape: f32[1,8], index: 10, kind: input, shape index: {}]
  %s11 = inlined_call_operand.vmem [shape: f32[16,8], index: 11, kind: output, shape index: {}]
  %s12 = sld [smem:[#allocation0]]
  $region66: #{tpu_custom_call.1} parent=0
    _
  %s14 = ssub.s32 1, %s12
  %s15 = scalar_select 0, %s14, %s12
  $region1: #{tpu_custom_call.1} parent=0
    #allocation2 [shape = 'u8[16384]{0}', space=vmem, size = 0x4000, scoped, tag = 'input window, operand 1, single buffered']
    #allocation3 [shape = 's32[1]{0}', space=sflag, size = 0x4, scoped, tag = 'scoped memory for tpu_custom_call.1']
    #allocation4 [shape = 'u8[512]{0}', space=vmem, size = 0x400, scoped, tag = 'input window, operand 5, single buffered']
    #allocation5 [shape = 's32[1]{0}', space=sflag, size = 0x4, scoped, tag = 'scoped memory for tpu_custom_call.1']
    #allocation6 [shape = 'u8[65536]{0}', space=vmem, size = 0x10000, scoped, tag = 'input window, operand 7, single buffered']
    %16 = vsyncpa [#allocation3], 0
    %17 = vsyncpa [#allocation5], 0
    // Predicated region
    $region2: #{tpu_custom_call.1} parent=1 // pred_check
      _
    $region3: #{tpu_custom_call.1} parent=1 // pred_check_branch
      %19 = sbr.rel (0) target = $region5
    $region4: #{tpu_custom_call.1} parent=1 // pred_region
      _
    $region5: #{tpu_custom_call.1} parent=1 // pred_fallthru
      _
    // Predicated region
    $region6: #{tpu_custom_call.1} parent=1 // pred_check
      _
    $region7: #{tpu_custom_call.1} parent=1 // pred_check_branch
      %21 = sbr.rel (0) target = $region9
    $region8: #{tpu_custom_call.1} parent=1 // pred_region
      %s23 = ssub.s32 512, 512
      %24 = vsyncadd [#allocation3], %s23
      %s25 = sshll.u32 [#allocation2], 4
      %s26 = int_to_ptr.vmem [resolvable:$true] %s25
      %31 = dma.hbm_to_vmem [thread:$0]  %s1, 512, %s26, [#allocation3], 128, 128, 8
    $region9: #{tpu_custom_call.1} parent=1 // pred_fallthru
      _
    // Predicated region
    $region10: #{tpu_custom_call.1} parent=1 // pred_check
      _
    $region11: #{tpu_custom_call.1} parent=1 // pred_check_branch
      %33 = sbr.rel (0) target = $region13
    $region12: #{tpu_custom_call.1} parent=1 // pred_region
      _
    $region13: #{tpu_custom_call.1} parent=1 // pred_fallthru
      _
    // Predicated region
    $region14: #{tpu_custom_call.1} parent=1 // pred_check
      _
    $region15: #{tpu_custom_call.1} parent=1 // pred_check_branch
      %35 = sbr.rel (0) target = $region17
    $region16: #{tpu_custom_call.1} parent=1 // pred_region
      _
    $region17: #{tpu_custom_call.1} parent=1 // pred_fallthru
      _
    // Predicated region
    $region18: #{tpu_custom_call.1} parent=1 // pred_check
      _
    $region19: #{tpu_custom_call.1} parent=1 // pred_check_branch
      %37 = sbr.rel (0) target = $region21
    $region20: #{tpu_custom_call.1} parent=1 // pred_region
      _
    $region21: #{tpu_custom_call.1} parent=1 // pred_fallthru
      _
    // Predicated region
    $region22: #{tpu_custom_call.1} parent=1 // pred_check
      _
    $region23: #{tpu_custom_call.1} parent=1 // pred_check_branch
      %39 = sbr.rel (0) target = $region25
    $region24: #{tpu_custom_call.1} parent=1 // pred_region
      %s41 = ssub.s32 16, 16
      %42 = vsyncadd [#allocation5], %s41
      %s44 = sshll.u32 [#allocation4], 4
      %s45 = int_to_ptr.vmem [resolvable:$true] %s44
      %47 = dma.hbm_to_vmem [thread:$0]  %s5, 16, %s45, [#allocation5]
    $region25: #{tpu_custom_call.1} parent=1 // pred_fallthru
      _
    // Predicated region
    $region26: #{tpu_custom_call.1} parent=1 // pred_check
      _
    $region27: #{tpu_custom_call.1} parent=1 // pred_check_branch
      %49 = sbr.rel (0) target = $region29
    $region28: #{tpu_custom_call.1} parent=1 // pred_region
      _
    $region29: #{tpu_custom_call.1} parent=1 // pred_fallthru
      _
    // Predicated region
    $region30: #{tpu_custom_call.1} parent=1 // pred_check
      _
    $region31: #{tpu_custom_call.1} parent=1 // pred_check_branch
      %51 = sbr.rel (0) target = $region33
    $region32: #{tpu_custom_call.1} parent=1 // pred_region
      %s53 = ssub.s32 2048, 2048
      %54 = vsyncadd [#allocation5], %s53
      %s55 = sshll.u32 [#allocation6], 4
      %s56 = int_to_ptr.vmem [resolvable:$true] %s55
      %61 = dma.hbm_to_vmem [thread:$0]  %s7, 2048, %s56, [#allocation5], 128, 128, 8
    $region33: #{tpu_custom_call.1} parent=1 // pred_fallthru
      _
    // Predicated region
    $region34: #{tpu_custom_call.1} parent=1 // pred_check
      _
    $region35: #{tpu_custom_call.1} parent=1 // pred_check_branch
      %63 = sbr.rel (0) target = $region37
    $region36: #{tpu_custom_call.1} parent=1 // pred_region
      _
    $region37: #{tpu_custom_call.1} parent=1 // pred_fallthru
      _
    // Predicated region
    $region38: #{tpu_custom_call.1} parent=1 // pred_check
      _
    $region39: #{tpu_custom_call.1} parent=1 // pred_check_branch
      %65 = sbr.rel (0) target = $region41
    $region40: #{tpu_custom_call.1} parent=1 // pred_region
      _
    $region41: #{tpu_custom_call.1} parent=1 // pred_fallthru
      _
    // Predicated region
    $region42: #{tpu_custom_call.1} parent=1 // pred_check
      _
    $region43: #{tpu_custom_call.1} parent=1 // pred_check_branch
      %67 = sbr.rel (0) target = $region45
    $region44: #{tpu_custom_call.1} parent=1 // pred_region
      _
    $region45: #{tpu_custom_call.1} parent=1 // pred_fallthru
      _
    // Predicated region
    $region46: #{tpu_custom_call.1} parent=1 // pred_check
      _
    $region47: #{tpu_custom_call.1} parent=1 // pred_check_branch
      %69 = sbr.rel (0) target = $region49
    $region48: #{tpu_custom_call.1} parent=1 // pred_region
      %70 = dma.done [#allocation3], 512
    $region49: #{tpu_custom_call.1} parent=1 // pred_fallthru
      _
    // Predicated region
    $region50: #{tpu_custom_call.1} parent=1 // pred_check
      _
    $region51: #{tpu_custom_call.1} parent=1 // pred_check_branch
      %72 = sbr.rel (0) target = $region53
    $region52: #{tpu_custom_call.1} parent=1 // pred_region
      %73 = dma.done [#allocation5], 16
    $region53: #{tpu_custom_call.1} parent=1 // pred_fallthru
      _
    // Predicated region
    $region54: #{tpu_custom_call.1} parent=1 // pred_check
      _
    $region55: #{tpu_custom_call.1} parent=1 // pred_check_branch
      %75 = sbr.rel (0) target = $region57
    $region56: #{tpu_custom_call.1} parent=1 // pred_region
      %76 = dma.done [#allocation5], 2048
    $region57: #{tpu_custom_call.1} parent=1 // pred_fallthru
      _
    %v77 = vld [vmem:[%s0] sm:$0xff]
    %v78 = vld [vmem:[%s0 + $0x8] sm:$0xff]
    %v79 = vld [vmem:[#allocation2] sm:$0xff]
    %v80 = vld [vmem:[#allocation2 + $0x8] sm:$0xff]
    %v81 = vld [vmem:[#allocation2 + $0x10] sm:$0xff]
    %v82 = vld [vmem:[#allocation2 + $0x18] sm:$0xff]
    %v83 = vld [vmem:[%s2] sm:$0x1]
    %v85 = vlaneseq
    %v86 = vshrl.u32 %v85, 7
    %v87 = vsub.s32 0, %v86
    %v88 = vrot.slane %v83, %v87
    %vm90 = vcmask 261120
    %v92 = vsel %vm90, %v77, 0
    %v95 = vsel %vm90, %v78, 0
    %97 = vmatprep.subr.mxu0 0.0
    %98 = vmatpush1.msra.mxu0 %v79
    %99 = vmatprep.subr.mxu0 0.0
    %100 = vmatpush1.msra.mxu0 %v80
    %101 = vmatprep.subr.mxu0 0.0
    %102 = vmatpush1.msra.mxu0 %v81
    %103 = vmatprep.subr.mxu0 0.0
    %104 = vmatpush1.msra.mxu0 %v82
    %105 = vmatprep.subr.mxu0 0.0
    %106 = vmatpush1.msra.mxu0 0.0
    %107 = vmatprep.subr.mxu0 0.0
    %108 = vmatpush1.msra.mxu0 0.0
    %109 = vmatprep.subr.mxu0 0.0
    %110 = vmatpush1.msra.mxu0 0.0
    %111 = vmatprep.subr.mxu0 0.0
    %112 = vmatpush1.msra.mxu0 0.0
    %113 = vmatprep.subr.mxu0 0.0
    %114 = vmatpush1.msra.mxu0 0.0
    %115 = vmatprep.subr.mxu0 0.0
    %116 = vmatpush1.msra.mxu0 0.0
    %117 = vmatprep.subr.mxu0 0.0
    %118 = vmatpush1.msra.mxu0 0.0
    %119 = vmatprep.subr.mxu0 0.0
    %120 = vmatpush1.msra.mxu0 0.0
    %121 = vmatprep.subr.mxu0 0.0
    %122 = vmatpush1.msra.mxu0 0.0
    %123 = vmatprep.subr.mxu0 0.0
    %124 = vmatpush1.msra.mxu0 0.0
    %125 = vmatprep.subr.mxu0 0.0
    %126 = vmatpush1.msra.mxu0 0.0
    %127 = vmatprep.subr.mxu0 0.0
    %128 = vmatpush1.msra.mxu0 0.0
    %129 = vmatprep.subr.mxu0 0.0
    %130 = vmatpush1.msra.mxu0 0.0
    %131 = vmatprep.subr.mxu0 0.0
    %132 = vmatpush1.msra.mxu0 0.0
    %133 = vmatprep.subr.mxu0 0.0
    %134 = vmatpush1.msra.mxu0 0.0
    %135 = vmatprep.subr.mxu0 0.0
    %136 = vmatpush1.msra.mxu0 0.0
    %137 = vmatprep.subr.mxu0 0.0
    %138 = vmatpush1.msra.mxu0 0.0
    %139 = vmatprep.subr.mxu0 0.0
    %140 = vmatpush1.msra.mxu0 0.0
    %141 = vmatprep.subr.mxu0 0.0
    %142 = vmatpush1.msra.mxu0 0.0
    %143 = vmatprep.subr.mxu0 0.0
    %144 = vmatpush1.msra.mxu0 0.0
    %145 = vmatprep.subr.mxu0 0.0
    %146 = vmatpush1.msra.mxu0 0.0
    %147 = vmatprep.subr.mxu0 0.0
    %148 = vmatpush1.msra.mxu0 0.0
    %149 = vmatprep.subr.mxu0 0.0
    %150 = vmatpush1.msra.mxu0 0.0
    %151 = vmatprep.subr.mxu0 0.0
    %152 = vmatpush1.msra.mxu0 0.0
    %153 = vmatprep.subr.mxu0 0.0
    %154 = vmatpush1.msra.mxu0 0.0
    %155 = vmatprep.subr.mxu0 0.0
    %156 = vmatpush1.msra.mxu0 0.0
    %157 = vmatprep.subr.mxu0 0.0
    %158 = vmatpush1.msra.mxu0 0.0
    %159 = vmatprep.subr.mxu0 0.0
    %160 = vmatpush1.msra.mxu0 0.0
    %161 = vmatprep.mubr.f32.mxu0 0.0
    %162 = vmatmul.mubr.f32.gmra.mrb[0].mxu0 %v92
    %v163 = vpop.f32.mrb[0].mxu0
    %v164 = vadd.f32 %v88, %v163
    %v165 = vpop.f32.mrb[0].mxu0
    %166 = vmatprep.mubr.f32.mxu0 0.0
    %167 = vmatmul.mubr.f32.gmra.mrb[0].mxu0 %v95
    %v168 = vpop.f32.mrb[0].mxu0
    %v169 = vadd.f32 %v88, %v168
    %v170 = vpop.f32.mrb[0].mxu0
    %171 = vdwg.mxu0
    %v172 = vmax.f32 %v164, 0.0
    %v173 = vmax.f32 %v169, 0.0
    %v174 = vld [vmem:[%s3] sm:$0xff]
    %v175 = vld [vmem:[%s3 + $0x8] sm:$0xff]
    %v176 = vld [vmem:[%s3 + $0x10] sm:$0xff]
    %v177 = vld [vmem:[%s3 + $0x18] sm:$0xff]
    %v178 = vld [vmem:[%s3 + $0x20] sm:$0xff]
    %v179 = vld [vmem:[%s3 + $0x28] sm:$0xff]
    %v180 = vld [vmem:[%s3 + $0x30] sm:$0xff]
    %v181 = vld [vmem:[%s3 + $0x38] sm:$0xff]
    %v182 = vld [vmem:[%s3 + $0x40] sm:$0xff]
    %v183 = vld [vmem:[%s3 + $0x48] sm:$0xff]
    %v184 = vld [vmem:[%s3 + $0x50] sm:$0xff]
    %v185 = vld [vmem:[%s3 + $0x58] sm:$0xff]
    %v186 = vld [vmem:[%s3 + $0x60] sm:$0xff]
    %v187 = vld [vmem:[%s3 + $0x68] sm:$0xff]
    %v188 = vld [vmem:[%s3 + $0x70] sm:$0xff]
    %v189 = vld [vmem:[%s3 + $0x78] sm:$0xff]
    %v190 = vld [vmem:[%s4] sm:$0x1]
    %v192 = vlaneseq
    %v193 = vshrl.u32 %v192, 7
    %v194 = vsub.s32 0, %v193
    %v195 = vrot.slane %v190, %v194
    %197 = vmatprep.subr.mxu0 0.0
    %198 = vmatpush1.msra.mxu0 %v174
    %199 = vmatprep.subr.mxu0 0.0
    %200 = vmatpush1.msra.mxu0 %v175
    %201 = vmatprep.subr.mxu0 0.0
    %202 = vmatpush1.msra.mxu0 %v176
    %203 = vmatprep.subr.mxu0 0.0
    %204 = vmatpush1.msra.mxu0 %v177
    %205 = vmatprep.subr.mxu0 0.0
    %206 = vmatpush1.msra.mxu0 %v178
    %207 = vmatprep.subr.mxu0 0.0
    %208 = vmatpush1.msra.mxu0 %v179
    %209 = vmatprep.subr.mxu0 0.0
    %210 = vmatpush1.msra.mxu0 %v180
    %211 = vmatprep.subr.mxu0 0.0
    %212 = vmatpush1.msra.mxu0 %v181
    %213 = vmatprep.subr.mxu0 0.0
    %214 = vmatpush1.msra.mxu0 %v182
    %215 = vmatprep.subr.mxu0 0.0
    %216 = vmatpush1.msra.mxu0 %v183
    %217 = vmatprep.subr.mxu0 0.0
    %218 = vmatpush1.msra.mxu0 %v184
    %219 = vmatprep.subr.mxu0 0.0
    %220 = vmatpush1.msra.mxu0 %v185
    %221 = vmatprep.subr.mxu0 0.0
    %222 = vmatpush1.msra.mxu0 %v186
    %223 = vmatprep.subr.mxu0 0.0
    %224 = vmatpush1.msra.mxu0 %v187
    %225 = vmatprep.subr.mxu0 0.0
    %226 = vmatpush1.msra.mxu0 %v188
    %227 = vmatprep.subr.mxu0 0.0
    %228 = vmatpush1.msra.mxu0 %v189
    %229 = vmatprep.subr.mxu0 0.0
    %230 = vmatpush1.msra.mxu0 0.0
    %231 = vmatprep.subr.mxu0 0.0
    %232 = vmatpush1.msra.mxu0 0.0
    %233 = vmatprep.subr.mxu0 0.0
    %234 = vmatpush1.msra.mxu0 0.0
    %235 = vmatprep.subr.mxu0 0.0
    %236 = vmatpush1.msra.mxu0 0.0
    %237 = vmatprep.subr.mxu0 0.0
    %238 = vmatpush1.msra.mxu0 0.0
    %239 = vmatprep.subr.mxu0 0.0
    %240 = vmatpush1.msra.mxu0 0.0
    %241 = vmatprep.subr.mxu0 0.0
    %242 = vmatpush1.msra.mxu0 0.0
    %243 = vmatprep.subr.mxu0 0.0
    %244 = vmatpush1.msra.mxu0 0.0
    %245 = vmatprep.subr.mxu0 0.0
    %246 = vmatpush1.msra.mxu0 0.0
    %247 = vmatprep.subr.mxu0 0.0
    %248 = vmatpush1.msra.mxu0 0.0
    %249 = vmatprep.subr.mxu0 0.0
    %250 = vmatpush1.msra.mxu0 0.0
    %251 = vmatprep.subr.mxu0 0.0
    %252 = vmatpush1.msra.mxu0 0.0
    %253 = vmatprep.subr.mxu0 0.0
    %254 = vmatpush1.msra.mxu0 0.0
    %255 = vmatprep.subr.mxu0 0.0
    %256 = vmatpush1.msra.mxu0 0.0
    %257 = vmatprep.subr.mxu0 0.0
    %258 = vmatpush1.msra.mxu0 0.0
    %259 = vmatprep.subr.mxu0 0.0
    %260 = vmatpush1.msra.mxu0 0.0
    %261 = vmatprep.mubr.f32.mxu0 0.0
    %262 = vmatmul.mubr.f32.gmra.mrb[0].mxu0 %v172
    %v263 = vpop.f32.mrb[0].mxu0
    %v264 = vadd.f32 %v195, %v263
    %v265 = vpop.f32.mrb[0].mxu0
    %266 = vmatprep.mubr.f32.mxu0 0.0
    %267 = vmatmul.mubr.f32.gmra.mrb[0].mxu0 %v173
    %v268 = vpop.f32.mrb[0].mxu0
    %v269 = vadd.f32 %v195, %v268
    %v270 = vpop.f32.mrb[0].mxu0
    %271 = vdwg.mxu0
    %v272 = vmul.f32 %v264, 0.01
    %v273 = vmul.f32 %v269, 0.01
    %v274 = vmax.f32 %v264, %v272
    %v275 = vmax.f32 %v269, %v273
    %276 = vadd.xlane.f32.xlu0 %v274
    %v277 = vpop.xlane.xlu0 %276
    %278 = vadd.xlane.f32.xlu0 %v275
    %v279 = vpop.xlane.xlu0 %278
    %v280 = vrcp.pop 128.0
    %v281 = vmul.f32 %v277, %v280
    %v282 = vmul.f32 %v279, %v280
    %v283 = vmul.f32 %v274, %v274
    %v284 = vmul.f32 %v275, %v275
    %285 = vadd.xlane.f32.xlu0 %v283
    %v286 = vpop.xlane.xlu0 %285
    %287 = vadd.xlane.f32.xlu0 %v284
    %v288 = vpop.xlane.xlu0 %287
    %v289 = vmul.f32 %v286, %v280
    %v290 = vmul.f32 %v288, %v280
    %v291 = vmul.f32 %v281, %v281
    %v292 = vmul.f32 %v282, %v282
    %v293 = vsub.f32 %v289, %v291
    %v294 = vsub.f32 %v290, %v292
    %v295 = vmax.f32 %v293, 0.0
    %v296 = vmax.f32 %v294, 0.0
    %v297 = vsub.f32 %v274, %v281
    %v298 = vsub.f32 %v275, %v282
    %v299 = vadd.f32 %v295, 1e-05
    %v300 = vadd.f32 %v296, 1e-05
    %v301 = vrsqrt.pop %v299
    %v302 = vrsqrt.pop %v300
    %v303 = vmul.f32 %v297, %v301
    %v304 = vmul.f32 %v298, %v302
    %v305 = vld [vmem:[#allocation4] sm:$0x1]
    %v307 = vlaneseq
    %v308 = vshrl.u32 %v307, 7
    %v309 = vsub.s32 0, %v308
    %v310 = vrot.slane %v305, %v309
    %v312 = vmul.f32 %v303, %v310
    %v313 = vmul.f32 %v304, %v310
    %v314 = vld [vmem:[%s6] sm:$0x1]
    %v316 = vlaneseq
    %v317 = vshrl.u32 %v316, 7
    %v318 = vsub.s32 0, %v317
    %v319 = vrot.slane %v314, %v318
    %v321 = vadd.f32 %v312, %v319
    %v322 = vadd.f32 %v313, %v319
    %v323 = vld [vmem:[#allocation6] sm:$0xff]
    %v324 = vld [vmem:[#allocation6 + $0x8] sm:$0xff]
    %v325 = vld [vmem:[#allocation6 + $0x10] sm:$0xff]
    %v326 = vld [vmem:[#allocation6 + $0x18] sm:$0xff]
    %v327 = vld [vmem:[#allocation6 + $0x20] sm:$0xff]
    %v328 = vld [vmem:[#allocation6 + $0x28] sm:$0xff]
    %v329 = vld [vmem:[#allocation6 + $0x30] sm:$0xff]
    %v330 = vld [vmem:[#allocation6 + $0x38] sm:$0xff]
    %v331 = vld [vmem:[#allocation6 + $0x40] sm:$0xff]
    %v332 = vld [vmem:[#allocation6 + $0x48] sm:$0xff]
    %v333 = vld [vmem:[#allocation6 + $0x50] sm:$0xff]
    %v334 = vld [vmem:[#allocation6 + $0x58] sm:$0xff]
    %v335 = vld [vmem:[#allocation6 + $0x60] sm:$0xff]
    %v336 = vld [vmem:[#allocation6 + $0x68] sm:$0xff]
    %v337 = vld [vmem:[#allocation6 + $0x70] sm:$0xff]
    %v338 = vld [vmem:[#allocation6 + $0x78] sm:$0xff]
    %v339 = vld [vmem:[%s8] sm:$0x1]
    %v341 = vlaneseq
    %v342 = vshrl.u32 %v341, 7
    %v343 = vsub.s32 0, %v342
    %v344 = vrot.slane %v339, %v343
    %346 = vmatprep.subr.mxu0 0.0
    %347 = vmatpush1.msra.mxu0 %v323
    %348 = vmatprep.subr.mxu0 0.0
    %349 = vmatpush1.msra.mxu0 %v324
    %350 = vmatprep.subr.mxu0 0.0
    %351 = vmatpush1.msra.mxu0 %v325
    %352 = vmatprep.subr.mxu0 0.0
    %353 = vmatpush1.msra.mxu0 %v326
    %354 = vmatprep.subr.mxu0 0.0
    %355 = vmatpush1.msra.mxu0 %v327
    %356 = vmatprep.subr.mxu0 0.0
    %357 = vmatpush1.msra.mxu0 %v328
    %358 = vmatprep.subr.mxu0 0.0
    %359 = vmatpush1.msra.mxu0 %v329
    %360 = vmatprep.subr.mxu0 0.0
    %361 = vmatpush1.msra.mxu0 %v330
    %362 = vmatprep.subr.mxu0 0.0
    %363 = vmatpush1.msra.mxu0 %v331
    %364 = vmatprep.subr.mxu0 0.0
    %365 = vmatpush1.msra.mxu0 %v332
    %366 = vmatprep.subr.mxu0 0.0
    %367 = vmatpush1.msra.mxu0 %v333
    %368 = vmatprep.subr.mxu0 0.0
    %369 = vmatpush1.msra.mxu0 %v334
    %370 = vmatprep.subr.mxu0 0.0
    %371 = vmatpush1.msra.mxu0 %v335
    %372 = vmatprep.subr.mxu0 0.0
    %373 = vmatpush1.msra.mxu0 %v336
    %374 = vmatprep.subr.mxu0 0.0
    %375 = vmatpush1.msra.mxu0 %v337
    %376 = vmatprep.subr.mxu0 0.0
    %377 = vmatpush1.msra.mxu0 %v338
    %378 = vmatprep.subr.mxu0 0.0
    %379 = vmatpush1.msra.mxu0 0.0
    %380 = vmatprep.subr.mxu0 0.0
    %381 = vmatpush1.msra.mxu0 0.0
    %382 = vmatprep.subr.mxu0 0.0
    %383 = vmatpush1.msra.mxu0 0.0
    %384 = vmatprep.subr.mxu0 0.0
    %385 = vmatpush1.msra.mxu0 0.0
    %386 = vmatprep.subr.mxu0 0.0
    %387 = vmatpush1.msra.mxu0 0.0
    %388 = vmatprep.subr.mxu0 0.0
    %389 = vmatpush1.msra.mxu0 0.0
    %390 = vmatprep.subr.mxu0 0.0
    %391 = vmatpush1.msra.mxu0 0.0
    %392 = vmatprep.subr.mxu0 0.0
    %393 = vmatpush1.msra.mxu0 0.0
    %394 = vmatprep.subr.mxu0 0.0
    %395 = vmatpush1.msra.mxu0 0.0
    %396 = vmatprep.subr.mxu0 0.0
    %397 = vmatpush1.msra.mxu0 0.0
    %398 = vmatprep.subr.mxu0 0.0
    %399 = vmatpush1.msra.mxu0 0.0
    %400 = vmatprep.subr.mxu0 0.0
    %401 = vmatpush1.msra.mxu0 0.0
    %402 = vmatprep.subr.mxu0 0.0
    %403 = vmatpush1.msra.mxu0 0.0
    %404 = vmatprep.subr.mxu0 0.0
    %405 = vmatpush1.msra.mxu0 0.0
    %406 = vmatprep.subr.mxu0 0.0
    %407 = vmatpush1.msra.mxu0 0.0
    %408 = vmatprep.subr.mxu0 0.0
    %409 = vmatpush1.msra.mxu0 0.0
    %410 = vmatprep.mubr.f32.mxu0 0.0
    %411 = vmatmul.mubr.f32.gmra.mrb[0].mxu0 %v321
    %v412 = vpop.f32.mrb[0].mxu0
    %v413 = vadd.f32 %v344, %v412
    %v414 = vpop.f32.mrb[0].mxu0
    %415 = vmatprep.mubr.f32.mxu0 0.0
    %416 = vmatmul.mubr.f32.gmra.mrb[0].mxu0 %v322
    %v417 = vpop.f32.mrb[0].mxu0
    %v418 = vadd.f32 %v344, %v417
    %v419 = vpop.f32.mrb[0].mxu0
    %420 = vdwg.mxu0
    %v421 = vmax.f32 %v413, 0.0
    %v422 = vmax.f32 %v418, 0.0
    %v423 = vld [vmem:[%s9] sm:$0xff]
    %v424 = vld [vmem:[%s9 + $0x8] sm:$0xff]
    %v425 = vld [vmem:[%s9 + $0x10] sm:$0xff]
    %v426 = vld [vmem:[%s9 + $0x18] sm:$0xff]
    %v427 = vld [vmem:[%s9 + $0x20] sm:$0xff]
    %v428 = vld [vmem:[%s9 + $0x28] sm:$0xff]
    %v429 = vld [vmem:[%s9 + $0x30] sm:$0xff]
    %v430 = vld [vmem:[%s9 + $0x38] sm:$0xff]
    %v431 = vld [vmem:[%s9 + $0x40] sm:$0xff]
    %v432 = vld [vmem:[%s9 + $0x48] sm:$0xff]
    %v433 = vld [vmem:[%s9 + $0x50] sm:$0xff]
    %v434 = vld [vmem:[%s9 + $0x58] sm:$0xff]
    %v435 = vld [vmem:[%s9 + $0x60] sm:$0xff]
    %v436 = vld [vmem:[%s9 + $0x68] sm:$0xff]
    %v437 = vld [vmem:[%s9 + $0x70] sm:$0xff]
    %v438 = vld [vmem:[%s9 + $0x78] sm:$0xff]
    %v439 = vld [vmem:[%s10] sm:$0x1]
    %v441 = vlaneseq
    %v442 = vshrl.u32 %v441, 7
    %v443 = vsub.s32 0, %v442
    %v444 = vrot.slane %v439, %v443
    %446 = vmatprep.subr.mxu0 0.0
    %447 = vmatpush1.msra.mxu0 %v423
    %448 = vmatprep.subr.mxu0 0.0
    %449 = vmatpush1.msra.mxu0 %v424
    %450 = vmatprep.subr.mxu0 0.0
    %451 = vmatpush1.msra.mxu0 %v425
    %452 = vmatprep.subr.mxu0 0.0
    %453 = vmatpush1.msra.mxu0 %v426
    %454 = vmatprep.subr.mxu0 0.0
    %455 = vmatpush1.msra.mxu0 %v427
    %456 = vmatprep.subr.mxu0 0.0
    %457 = vmatpush1.msra.mxu0 %v428
    %458 = vmatprep.subr.mxu0 0.0
    %459 = vmatpush1.msra.mxu0 %v429
    %460 = vmatprep.subr.mxu0 0.0
    %461 = vmatpush1.msra.mxu0 %v430
    %462 = vmatprep.subr.mxu0 0.0
    %463 = vmatpush1.msra.mxu0 %v431
    %464 = vmatprep.subr.mxu0 0.0
    %465 = vmatpush1.msra.mxu0 %v432
    %466 = vmatprep.subr.mxu0 0.0
    %467 = vmatpush1.msra.mxu0 %v433
    %468 = vmatprep.subr.mxu0 0.0
    %469 = vmatpush1.msra.mxu0 %v434
    %470 = vmatprep.subr.mxu0 0.0
    %471 = vmatpush1.msra.mxu0 %v435
    %472 = vmatprep.subr.mxu0 0.0
    %473 = vmatpush1.msra.mxu0 %v436
    %474 = vmatprep.subr.mxu0 0.0
    %475 = vmatpush1.msra.mxu0 %v437
    %476 = vmatprep.subr.mxu0 0.0
    %477 = vmatpush1.msra.mxu0 %v438
    %478 = vmatprep.subr.mxu0 0.0
    %479 = vmatpush1.msra.mxu0 0.0
    %480 = vmatprep.subr.mxu0 0.0
    %481 = vmatpush1.msra.mxu0 0.0
    %482 = vmatprep.subr.mxu0 0.0
    %483 = vmatpush1.msra.mxu0 0.0
    %484 = vmatprep.subr.mxu0 0.0
    %485 = vmatpush1.msra.mxu0 0.0
    %486 = vmatprep.subr.mxu0 0.0
    %487 = vmatpush1.msra.mxu0 0.0
    %488 = vmatprep.subr.mxu0 0.0
    %489 = vmatpush1.msra.mxu0 0.0
    %490 = vmatprep.subr.mxu0 0.0
    %491 = vmatpush1.msra.mxu0 0.0
    %492 = vmatprep.subr.mxu0 0.0
    %493 = vmatpush1.msra.mxu0 0.0
    %494 = vmatprep.subr.mxu0 0.0
    %495 = vmatpush1.msra.mxu0 0.0
    %496 = vmatprep.subr.mxu0 0.0
    %497 = vmatpush1.msra.mxu0 0.0
    %498 = vmatprep.subr.mxu0 0.0
    %499 = vmatpush1.msra.mxu0 0.0
    %500 = vmatprep.subr.mxu0 0.0
    %501 = vmatpush1.msra.mxu0 0.0
    %502 = vmatprep.subr.mxu0 0.0
    %503 = vmatpush1.msra.mxu0 0.0
    %504 = vmatprep.subr.mxu0 0.0
    %505 = vmatpush1.msra.mxu0 0.0
    %506 = vmatprep.subr.mxu0 0.0
    %507 = vmatpush1.msra.mxu0 0.0
    %508 = vmatprep.subr.mxu0 0.0
    %509 = vmatpush1.msra.mxu0 0.0
    %510 = vmatprep.mubr.f32.mxu0 0.0
    %511 = vmatmul.mubr.f32.gmra.mrb[0].mxu0 %v421
    %v512 = vpop.f32.mrb[0].mxu0
    %v513 = vadd.f32 %v444, %v512
    %v514 = vpop.f32.mrb[0].mxu0
    %515 = vmatprep.mubr.f32.mxu0 0.0
    %516 = vmatmul.mubr.f32.gmra.mrb[0].mxu0 %v422
    %v517 = vpop.f32.mrb[0].mxu0
    %v518 = vadd.f32 %v444, %v517
    %v519 = vpop.f32.mrb[0].mxu0
    %520 = vdwg.mxu0
    %vm521 = vcmask 64512
    %522 = vst.msk [vmem:[%s11] sm:$0xff] %vm521, %v513
    %523 = vst.msk [vmem:[%s11 + $0x8] sm:$0xff] %vm521, %v518
    // Predicated region
    $region58: #{tpu_custom_call.1} parent=1 // pred_check
      _
    $region59: #{tpu_custom_call.1} parent=1 // pred_check_branch
      %525 = sbr.rel (0) target = $region61
    $region60: #{tpu_custom_call.1} parent=1 // pred_region
      _
    $region61: #{tpu_custom_call.1} parent=1 // pred_fallthru
      _
    // Predicated region
    $region62: #{tpu_custom_call.1} parent=1 // pred_check
      _
    $region63: #{tpu_custom_call.1} parent=1 // pred_check_branch
      %527 = sbr.rel (0) target = $region65
    $region64: #{tpu_custom_call.1} parent=1 // pred_region
      _
    $region65: #{tpu_custom_call.1} parent=1 // pred_fallthru
      _
    %528 = vsyncpa [#allocation3], 1
    %529 = vsyncpa [#allocation5], 1

</llo_original>
